<compile_context>
chip_gen: v5e
topology: v5e:2x2
jax: 0.10.0
libtpu: 0.0.40
codegen_flags: <defaults>
</compile_context>

<pallas_src>
import jax
import jax.numpy as jnp
from jax.experimental import pallas as pl
from jax.experimental.pallas import tpu as pltpu


def _round_up(x: int, m: int) -> int:
    return ((x + m - 1) // m) * m


def _make_layernorm_kernel(eps: float, features: int):
    # features == 1 is degenerate for unbiased std (torch.std returns nan);
    # guard the constant so we don't divide by zero at trace time.
    inv_nm1 = 1.0 / float(max(features - 1, 1))

    def kernel(x_ref, gamma_ref, beta_ref, o_ref):
        # NOTE: on the final (partial) grid step the rows past `rows` hold
        # padded/stale data.  All math below is row-independent and the writes
        # for those rows are masked, so they never contaminate real outputs.
        # Do NOT add any cross-row reduction here without masking those rows.
        x = x_ref[...].astype(jnp.float32)            # (row_tile, F)
        gamma = gamma_ref[...]                        # (1, F), f32
        beta = beta_ref[...]                          # (1, F), f32

        mean = jnp.mean(x, axis=-1, keepdims=True)    # (row_tile, 1)
        centered = x - mean
        # Unbiased variance (ddof = 1), matching torch.std default.
        var = jnp.sum(centered * centered, axis=-1, keepdims=True) * inv_nm1
        denom = jnp.sqrt(var) + eps                   # eps added to std, not variance
        # Reciprocal on the EUP; one Newton-Raphson step restores ~f32 accuracy
        # (~1-2 ulp off exact divide; swap for a true divide if bit-parity with
        # the PyTorch module is ever required).
        inv = pl.reciprocal(denom, approx=True)
        inv = inv * (2.0 - denom * inv)               # (row_tile, 1)

        o_ref[...] = (centered * (gamma * inv) + beta).astype(o_ref.dtype)

    return kernel


def layer_norm(x, a_2, b_2, eps=1e-6, *, row_tile=None, vmem_budget_bytes=None,
               input_buffer_count=None):
    """x: (..., F); a_2, b_2: (F,). Returns same shape/dtype as x."""
    orig_shape = x.shape
    features = int(orig_shape[-1])
    rows = 1
    for d in orig_shape[:-1]:
        rows *= int(d)
    rows = max(rows, 1)
    x2 = x.reshape(rows, features)

    # TODO(synk): if production ever uses F % 128 != 0, repack rows into lane
    # groups in the wrapper (e.g. (rows, 32) -> (rows/4, 128)) plus a segmented
    # in-lane reduction, so stores stay lane-dense instead of masked vst.msk.

    # Pre-cast params once in the wrapper (no per-step casts in the kernel).
    gamma = a_2.astype(jnp.float32).reshape(1, features)
    beta = b_2.astype(jnp.float32).reshape(1, features)

    itemsize = jnp.dtype(x.dtype).itemsize
    # Sublane packing: 8 rows for 4-byte, 16 for 2-byte, 32 for 1-byte dtypes.
    row_align = max(8, 32 // itemsize)

    # Generation-aware VMEM capacity / budget for tile selection.
    try:
        vmem_cap = int(pltpu.get_tpu_info().vmem_capacity_bytes)
    except Exception:
        vmem_cap = 64 * 1024 * 1024  # conservative: v7x physical VMEM per TC
    if vmem_budget_bytes is None:
        vmem_budget_bytes = vmem_cap // 4

    # Per-row VMEM cost: double-buffered in + out tiles at native dtype, PLUS
    # the in-kernel f32 intermediates (x_f32, centered, pre-cast result) which
    # are not double-buffered but must fit alongside the live buffers.  For
    # bf16/int8 inputs the intermediates dominate, so they must be budgeted.
    io_bytes_per_row = 2 * 2 * features * itemsize
    compute_bytes_per_row = 3 * features * 4
    bytes_per_row = io_bytes_per_row + compute_bytes_per_row
    param_bytes = 2 * 2 * features * 4            # gamma/beta (1,F) f32, double-buffered

    # Feature-dependent row cap: for small F, keep per-step DMA time well above
    # the ~0.35 us fixed grid-step overhead (matters most at v7x's 3.2 TB/s).
    if features <= 512:
        row_cap = 4096
    elif features <= 1024:
        row_cap = 2048
    else:
        row_cap = 1024

    if row_tile is None:
        max_rows = max(row_align, (vmem_budget_bytes - param_bytes) // bytes_per_row)
        row_tile = min(int(max_rows), row_cap, _round_up(rows, row_align))

    # Keep >= 2 grid steps (target ~8 when rows permit) so v7x's two
    # TensorCores both get work and the DMA pipeline actually overlaps.
    if rows >= 8 * row_align:
        target_steps = 8
    elif rows >= 2 * row_align:
        target_steps = 2
    else:
        target_steps = 1
    if target_steps > 1:
        row_tile = min(int(row_tile), _round_up(pl.cdiv(rows, target_steps), row_align))

    row_tile = max(row_align, (int(row_tile) // row_align) * row_align)
    grid = (pl.cdiv(rows, row_tile),)

    # Scoped-VMEM limit sized to what we actually use (io + f32 intermediates +
    # params + margin), clamped to this generation's physical VMEM.
    needed = row_tile * bytes_per_row + param_bytes
    vmem_limit = int(min(vmem_cap, max(needed + (2 << 20), 16 << 20)))

    # Advisory cost estimate so XLA overlaps this call correctly with neighbors.
    cost = pl.CostEstimate(
        flops=6 * rows * features,
        transcendentals=2 * rows,                       # sqrt + reciprocal per row
        bytes_accessed=2 * rows * features * itemsize + 2 * features * 4,
    )

    # Optional deeper input pipelining (worth a sweep only on v5e if the trace
    # shows exposed DMA at grid-step boundaries; default stays double-buffered).
    x_spec_kwargs = {}
    if input_buffer_count is not None:
        x_spec_kwargs["pipeline_mode"] = pl.Buffered(int(input_buffer_count))

    out = pl.pallas_call(
        _make_layernorm_kernel(float(eps), features),
        out_shape=jax.ShapeDtypeStruct((rows, features), x.dtype),
        grid_spec=pltpu.PrefetchScalarGridSpec(
            num_scalar_prefetch=0,
            grid=grid,
            in_specs=[
                pl.BlockSpec((row_tile, features), lambda i: (i, 0), **x_spec_kwargs),
                pl.BlockSpec((1, features), lambda i: (0, 0)),
                pl.BlockSpec((1, features), lambda i: (0, 0)),
            ],
            out_specs=pl.BlockSpec((row_tile, features), lambda i: (i, 0)),
        ),
        compiler_params=pltpu.CompilerParams(
            dimension_semantics=("parallel",),
            vmem_limit_bytes=vmem_limit,
        ),
        cost_estimate=cost,
    )(x2, gamma, beta)

    return out.reshape(orig_shape)


def _reference(x, a_2, b_2, eps):
    features = x.shape[-1]
    mean = jnp.mean(x, axis=-1, keepdims=True)
    std = jnp.sqrt(jnp.sum((x - mean) ** 2, axis=-1, keepdims=True) / (features - 1))
    return a_2 * (x - mean) / (std + eps) + b_2


if __name__ == "__main__":
    key = jax.random.PRNGKey(0)
    eps = 1e-6

    # Primary (lane-dense) case: F = 128 is a multiple of the 128-lane width.
    batch, seq, hidden = 2, 8, 128
    x = jax.random.normal(key, (batch, seq, hidden), dtype=jnp.float32)
    a_2 = jnp.ones((hidden,), dtype=jnp.float32)   # nn.Parameter(torch.ones(features))
    b_2 = jnp.zeros((hidden,), dtype=jnp.float32)  # nn.Parameter(torch.zeros(features))

    out = layer_norm(x, a_2, b_2, eps)
    out = jax.block_until_ready(out)
    ref = _reference(x, a_2, b_2, eps)
    assert out.shape == x.shape and out.dtype == x.dtype
    assert jnp.allclose(out, ref, atol=1e-5, rtol=1e-5)

    # Secondary correctness check with a small, non-lane-dense feature dim (F=32).
    hidden2 = 32
    x2 = jax.random.normal(jax.random.PRNGKey(1), (2, 8, hidden2), dtype=jnp.float32)
    a2 = jnp.ones((hidden2,), dtype=jnp.float32)
    b2 = jnp.zeros((hidden2,), dtype=jnp.float32)
    out2 = jax.block_until_ready(layer_norm(x2, a2, b2, eps))
    ref2 = _reference(x2, a2, b2, eps)
    assert jnp.allclose(out2, ref2, atol=1e-5, rtol=1e-5)

    # bf16 input check (exercises the f32-intermediate VMEM accounting path).
    xb = jax.random.normal(jax.random.PRNGKey(2), (4, 8, hidden), dtype=jnp.bfloat16)
    outb = jax.block_until_ready(layer_norm(xb, a_2, b_2, eps))
    refb = _reference(xb.astype(jnp.float32), a_2, b_2, eps).astype(jnp.bfloat16)
    assert outb.dtype == jnp.bfloat16
    assert jnp.allclose(outb.astype(jnp.float32), refb.astype(jnp.float32),
                        atol=2e-2, rtol=2e-2)

    print("KERNEL_OK")
</pallas_src>

<mosaic_0001>
module attributes {stable_mosaic.version = 11 : i64} {
  func.func @kernel(%arg0: i32, %arg1: memref<8x128xf32, #tpu.memory_space<vmem>>, %arg2: memref<1x128xf32, #tpu.memory_space<vmem>>, %arg3: memref<1x128xf32, #tpu.memory_space<vmem>>, %arg4: memref<8x128xf32, #tpu.memory_space<vmem>>) attributes {dimension_semantics = [#tpu.dimension_semantics<parallel>], iteration_bounds = array<i64: 2>, scalar_prefetch = 0 : i64, scratch_operands = 0 : i64, tpu.core_type = #tpu.core_type<tc>, window_params = [{transform_indices = @transform_0, window_bounds = array<i64: 8, 128>}, {pipeline_mode = #tpu.pipeline_mode<synchronous>, transform_indices = @transform_1, window_bounds = array<i64: 1, 128>}, {pipeline_mode = #tpu.pipeline_mode<synchronous>, transform_indices = @transform_2, window_bounds = array<i64: 1, 128>}, {transform_indices = @transform_3, window_bounds = array<i64: 8, 128>}]} {
    %c0 = arith.constant 0 : index
    %c0_0 = arith.constant 0 : index
    %0 = vector.load %arg1[%c0, %c0_0] : memref<8x128xf32, #tpu.memory_space<vmem>>, vector<8x128xf32>
    %c0_1 = arith.constant 0 : index
    %c0_2 = arith.constant 0 : index
    %1 = vector.load %arg2[%c0_1, %c0_2] : memref<1x128xf32, #tpu.memory_space<vmem>>, vector<1x128xf32>
    %c0_3 = arith.constant 0 : index
    %c0_4 = arith.constant 0 : index
    %2 = vector.load %arg3[%c0_3, %c0_4] : memref<1x128xf32, #tpu.memory_space<vmem>>, vector<1x128xf32>
    %cst = arith.constant dense<0.000000e+00> : vector<8xf32>
    %3 = vector.multi_reduction <add>, %0, %cst [1] : vector<8x128xf32> to vector<8xf32>
    %4 = vector.shape_cast %3 : vector<8xf32> to vector<8x1xf32>
    %cst_5 = arith.constant 1.280000e+02 : f32
    %5 = vector.broadcast %cst_5 : f32 to vector<8x1xf32>
    %6 = arith.divf %4, %5 : vector<8x1xf32>
    %7 = vector.broadcast %6 : vector<8x1xf32> to vector<8x128xf32>
    %8 = arith.subf %0, %7 : vector<8x128xf32>
    %9 = arith.mulf %8, %8 : vector<8x128xf32>
    %cst_6 = arith.constant dense<0.000000e+00> : vector<8xf32>
    %10 = vector.multi_reduction <add>, %9, %cst_6 [1] : vector<8x128xf32> to vector<8xf32>
    %11 = vector.shape_cast %10 : vector<8xf32> to vector<8x1xf32>
    %cst_7 = arith.constant 0.00787401571 : f32
    %12 = vector.broadcast %cst_7 : f32 to vector<8x1xf32>
    %13 = arith.mulf %11, %12 : vector<8x1xf32>
    %14 = math.sqrt %13 : vector<8x1xf32>
    %cst_8 = arith.constant 9.99999997E-7 : f32
    %15 = vector.broadcast %cst_8 : f32 to vector<8x1xf32>
    %16 = arith.addf %14, %15 : vector<8x1xf32>
    %17 = tpu.reciprocal %16 {approx = true} : vector<8x1xf32> -> vector<8x1xf32>
    %18 = arith.mulf %16, %17 : vector<8x1xf32>
    %cst_9 = arith.constant 2.000000e+00 : f32
    %19 = vector.broadcast %cst_9 : f32 to vector<8x1xf32>
    %20 = arith.subf %19, %18 : vector<8x1xf32>
    %21 = arith.mulf %17, %20 : vector<8x1xf32>
    %22 = vector.broadcast %1 : vector<1x128xf32> to vector<8x128xf32>
    %23 = vector.broadcast %21 : vector<8x1xf32> to vector<8x128xf32>
    %24 = arith.mulf %22, %23 : vector<8x128xf32>
    %25 = arith.mulf %8, %24 : vector<8x128xf32>
    %26 = vector.broadcast %2 : vector<1x128xf32> to vector<8x128xf32>
    %27 = arith.addf %25, %26 : vector<8x128xf32>
    %c0_10 = arith.constant 0 : index
    %c0_11 = arith.constant 0 : index
    %28 = vector.load %arg4[%c0_10, %c0_11] : memref<8x128xf32, #tpu.memory_space<vmem>>, vector<8x128xf32>
    tpu.vector_store %arg4[%c0_10, %c0_11], %27 {strides = array<i32>} : memref<8x128xf32, #tpu.memory_space<vmem>>, vector<8x128xf32>,
    return
  }
  func.func @transform_0(%arg0: i32) -> (i32, i32) {
    %c0_i32 = arith.constant 0 : i32
    %c0_i32_0 = arith.constant 0 : i32
    return %arg0, %c0_i32 : i32, i32
  }
  func.func @transform_1(%arg0: i32) -> (i32, i32) {
    %c0_i32 = arith.constant 0 : i32
    %c0_i32_0 = arith.constant 0 : i32
    %c0_i32_1 = arith.constant 0 : i32
    return %c0_i32, %c0_i32_0 : i32, i32
  }
  func.func @transform_2(%arg0: i32) -> (i32, i32) {
    %c0_i32 = arith.constant 0 : i32
    %c0_i32_0 = arith.constant 0 : i32
    %c0_i32_1 = arith.constant 0 : i32
    return %c0_i32, %c0_i32_0 : i32, i32
  }
  func.func @transform_3(%arg0: i32) -> (i32, i32) {
    %c0_i32 = arith.constant 0 : i32
    %c0_i32_0 = arith.constant 0 : i32
    return %arg0, %c0_i32 : i32, i32
  }
}

</mosaic_0001>

<llo_original>
// kernel: tpu_custom_call.1
$region0: #{tpu_custom_call.1}
  #allocation0 [shape = 'u32[]', space=smem, size = 0x4, offset = 0x4, fixed_abs, tag = 'smem constant byte address 0x4 - core index']
  #allocation1 [shape = 'u32[72,128]{1,0:T(1,128)}', space=vmem, size = 0x9000, scoped, tag = 'internal scratch']
  %s0 = inlined_call_operand.hbm [shape: f32[16,128], index: 0, kind: input, shape index: {}]
  %s1 = inlined_call_operand.hbm [shape: f32[1,128], index: 1, kind: input, shape index: {}]
  %s2 = inlined_call_operand.vmem [shape: f32[1,128], index: 2, kind: input, shape index: {}]
  %s3 = inlined_call_operand.hbm [shape: f32[16,128], index: 3, kind: output, shape index: {}]
  %s4 = sld [smem:[#allocation0]]
  $region53: #{tpu_custom_call.1} parent=0
    _
  %s6 = ssub.s32 1, %s4
  %s7 = scalar_select 0, %s6, %s4
  $region1: #{tpu_custom_call.1} parent=0
    #allocation2 [shape = 'u8[8192]{0}', space=vmem, size = 0x2000, scoped, tag = 'input window, operand 0']
    #allocation3 [shape = 's32[2]{0}', space=sflag, size = 0x8, scoped, tag = 'scoped memory for tpu_custom_call.1']
    #allocation4 [shape = 's32[2]{0}', space=sflag, size = 0x8, scoped, tag = 'scoped memory for tpu_custom_call.1']
    #allocation5 [shape = 'u8[512]{0}', space=vmem, size = 0x400, scoped, tag = 'input window, operand 1, single buffered']
    #allocation6 [shape = 's32[1]{0}', space=sflag, size = 0x4, scoped, tag = 'scoped memory for tpu_custom_call.1']
    #allocation7 [shape = 'u8[8192]{0}', space=vmem, size = 0x2000, scoped, tag = 'output window, operand 0']
    %8 = vsyncpa [#allocation3], 0
    %s9 = scalar_lea.sflag [#allocation3], 1
    %10 = vsyncpa %s9, 0
    %11 = vsyncpa [#allocation6], 0
    %12 = vsyncpa [#allocation4], 0
    %s13 = scalar_lea.sflag [#allocation4], 1
    %14 = vsyncpa %s13, 0
    loop: start=0, step=1, limit=4
    $region2: #{tpu_custom_call.1} parent=1 // loop_pre_header
      _
    $region3: #{tpu_custom_call.1} parent=1 // loop_header
      %s16 = sphi 0, %s20
      %p17 = scmp.ge.s32.totalorder %s16, 4
      %s26 = sphi 0, %s28
      %s29 = sphi 0, %s26
      %s30 = sphi 0, %s29
      %s46 = sphi 0, %s30
      %s50 = sphi 0, %s50
      %s52 = sphi 0, %s50
      %s53 = sphi 0, %s52
      %s67 = sphi 0, %s53
      %s71 = sphi 0, %s71
      %s73 = sphi 0, %s71
      %s74 = sphi 0, %s73
      %s88 = sphi 0, %s74
      %s94 = sphi 0, %s96
      %s97 = sphi 0, %s94
      %s98 = sphi 0, %s97
      %s114 = sphi 0, %s98
    $region4: #{tpu_custom_call.1} parent=1 // loop_header_branch
      %19 = sbr.rel (%p17) target = $region8
    $region5: #{tpu_custom_call.1} parent=1 // loop_body
      %s21 = ssub.s32 %s16, 1
      %s22 = ssub.s32 %s16, 2
      %s23 = sadd.s32 %s16, 1
      %s24 = ssub.s32 %s16, %s23
      %p25 = scmp.eq.s32.totalorder %s24, 0
      %s27 = sadd.s32 %s26, 1
      %s28 = scalar_select %p25, %s26, %s27
      %p31 = pneg %p25
      %p32 = scmp.eq.s32.totalorder %s16, 1
      %p33 = por %p31, %p32
      %p34 = scmp.ne.s32.totalorder %s26, %s29
      %p35 = scmp.eq.s32.totalorder %s16, 0
      %p36 = por %p34, %p35
      %p37 = scmp.ne.s32.totalorder %s26, %s29
      %p38 = scmp.eq.s32.totalorder %s21, 1
      %p39 = por %p37, %p38
      %p40 = scmp.ne.s32.totalorder %s29, %s30
      %p41 = scmp.eq.s32.totalorder %s21, 0
      %p42 = por %p40, %p41
      %p43 = scmp.ne.s32.totalorder %s29, %s30
      %p44 = scmp.eq.s32.totalorder %s22, 1
      %p45 = por %p43, %p44
      %p47 = scmp.ne.s32.totalorder %s30, %s46
      %p48 = scmp.eq.s32.totalorder %s22, 0
      %p49 = por %p47, %p48
      %s51 = sadd.s32 %s50, 1
      %p54 = scmp.eq.s32.totalorder %s16, 1
      %p55 = scmp.ne.s32.totalorder %s50, %s52
      %p56 = scmp.eq.s32.totalorder %s16, 0
      %p57 = por %p55, %p56
      %p58 = scmp.ne.s32.totalorder %s50, %s52
      %p59 = scmp.eq.s32.totalorder %s21, 1
      %p60 = por %p58, %p59
      %p61 = scmp.ne.s32.totalorder %s52, %s53
      %p62 = scmp.eq.s32.totalorder %s21, 0
      %p63 = por %p61, %p62
      %p64 = scmp.ne.s32.totalorder %s52, %s53
      %p65 = scmp.eq.s32.totalorder %s22, 1
      %p66 = por %p64, %p65
      %p68 = scmp.ne.s32.totalorder %s53, %s67
      %p69 = scmp.eq.s32.totalorder %s22, 0
      %p70 = por %p68, %p69
      %s72 = sadd.s32 %s71, 1
      %p75 = scmp.eq.s32.totalorder %s16, 1
      %p76 = scmp.ne.s32.totalorder %s71, %s73
      %p77 = scmp.eq.s32.totalorder %s16, 0
      %p78 = por %p76, %p77
      %p79 = scmp.ne.s32.totalorder %s71, %s73
      %p80 = scmp.eq.s32.totalorder %s21, 1
      %p81 = por %p79, %p80
      %p82 = scmp.ne.s32.totalorder %s73, %s74
      %p83 = scmp.eq.s32.totalorder %s21, 0
      %p84 = por %p82, %p83
      %p85 = scmp.ne.s32.totalorder %s73, %s74
      %p86 = scmp.eq.s32.totalorder %s22, 1
      %p87 = por %p85, %p86
      %p89 = scmp.ne.s32.totalorder %s74, %s88
      %p90 = scmp.eq.s32.totalorder %s22, 0
      %p91 = por %p89, %p90
      %s92 = ssub.s32 %s16, %s23
      %p93 = scmp.eq.s32.totalorder %s92, 0
      %s95 = sadd.s32 %s94, 1
      %s96 = scalar_select %p93, %s94, %s95
      %p99 = pneg %p93
      %p100 = scmp.eq.s32.totalorder %s16, 1
      %p101 = por %p99, %p100
      %p102 = scmp.ne.s32.totalorder %s94, %s97
      %p103 = scmp.eq.s32.totalorder %s16, 0
      %p104 = por %p102, %p103
      %p105 = scmp.ne.s32.totalorder %s94, %s97
      %p106 = scmp.eq.s32.totalorder %s21, 1
      %p107 = por %p105, %p106
      %p108 = scmp.ne.s32.totalorder %s97, %s98
      %p109 = scmp.eq.s32.totalorder %s21, 0
      %p110 = por %p108, %p109
      %p111 = scmp.ne.s32.totalorder %s97, %s98
      %p112 = scmp.eq.s32.totalorder %s22, 1
      %p113 = por %p111, %p112
      %p115 = scmp.ne.s32.totalorder %s98, %s114
      %p116 = scmp.eq.s32.totalorder %s22, 0
      %p117 = por %p115, %p116
      %p118 = scmp.le.s32.totalorder 1, %s16
      %p119 = scmp.lt.s32.totalorder %s16, 3
      %p120 = pnand %p118, %p119
      %p121 = pneg %p120
      // Predicated region
      $region9: #{tpu_custom_call.1} parent=5 // pred_check
        _
      $region10: #{tpu_custom_call.1} parent=5 // pred_check_branch
        %123 = sbr.rel (%p120) target = $region12
      $region11: #{tpu_custom_call.1} parent=5 // pred_region
        %s124 = ssub.s32 %s16, 1
        // Predicated region
        $region13: #{tpu_custom_call.1} parent=11 // pred_check
          %p125 = pneg %p63
        $region14: #{tpu_custom_call.1} parent=11 // pred_check_branch
          %127 = sbr.rel (%p125) target = $region16
        $region15: #{tpu_custom_call.1} parent=11 // pred_region
          %129 = vsyncadd [#allocation6], 0
          %s131 = sshll.u32 %s1, 4
          %s132 = int_to_ptr.hbm [resolvable:$true] %s131
          %s133 = sshll.u32 [#allocation5], 4
          %s134 = int_to_ptr.vmem [resolvable:$true] %s133
          %136 = dma.hbm_to_vmem [thread:$0]  %s132, 16, %s134, [#allocation6]
        $region16: #{tpu_custom_call.1} parent=11 // pred_fallthru
          _
        // Predicated region
        $region17: #{tpu_custom_call.1} parent=11 // pred_check
          %p137 = pneg %p84
        $region18: #{tpu_custom_call.1} parent=11 // pred_check_branch
          %139 = sbr.rel (%p137) target = $region20
        $region19: #{tpu_custom_call.1} parent=11 // pred_region
          _
        $region20: #{tpu_custom_call.1} parent=11 // pred_fallthru
          _
      $region12: #{tpu_custom_call.1} parent=5 // pred_fallthru
        _
      %p140 = scmp.lt.s32.totalorder %s16, 2
      // Predicated region
      $region21: #{tpu_custom_call.1} parent=5 // pred_check
        %p141 = pneg %p140
      $region22: #{tpu_custom_call.1} parent=5 // pred_check_branch
        %143 = sbr.rel (%p141) target = $region24
      $region23: #{tpu_custom_call.1} parent=5 // pred_region
        // Predicated region
        $region25: #{tpu_custom_call.1} parent=23 // pred_check
          %p144 = pneg %p36
        $region26: #{tpu_custom_call.1} parent=23 // pred_check_branch
          %146 = sbr.rel (%p144) target = $region28
        $region27: #{tpu_custom_call.1} parent=23 // pred_region
          %s147 = sand.u32 %s26, 1
          %s148 = scalar_lea.sflag [#allocation3], %s147
          %s149 = sand.u32 %s26, 1
          %s150 = smul.addr %s149, 8
          %s151 = scalar_lea.vmem [#allocation2], %s150
          %153 = vsyncadd %s148, 0
          %s154 = smul.addr %s16, 8
          %s155 = scalar_lea.hbm %s0, %s154
          %s157 = sshll.u32 %s155, 4
          %s158 = int_to_ptr.hbm [resolvable:$true] %s157
          %s159 = sshll.u32 %s151, 4
          %s160 = int_to_ptr.vmem [resolvable:$true] %s159
          %162 = dma.hbm_to_vmem [thread:$0]  %s158, 128, %s160, %s148
        $region28: #{tpu_custom_call.1} parent=23 // pred_fallthru
          _
      $region24: #{tpu_custom_call.1} parent=5 // pred_fallthru
        _
      %p163 = scmp.le.s32.totalorder 1, %s16
      %p164 = scmp.lt.s32.totalorder %s16, 3
      %p165 = pnand %p163, %p164
      %p166 = pneg %p165
      // Predicated region
      $region29: #{tpu_custom_call.1} parent=5 // pred_check
        _
      $region30: #{tpu_custom_call.1} parent=5 // pred_check_branch
        %168 = sbr.rel (%p165) target = $region32
      $region31: #{tpu_custom_call.1} parent=5 // pred_region
        %s169 = ssub.s32 %s16, 1
        %s170 = sand.u32 %s29, 1
        %s171 = scalar_lea.sflag [#allocation3], %s170
        %s172 = sand.u32 %s29, 1
        %s173 = smul.addr %s172, 8
        %s174 = scalar_lea.vmem [#allocation2], %s173
        // Predicated region
        $region33: #{tpu_custom_call.1} parent=31 // pred_check
          %p175 = pneg %p42
        $region34: #{tpu_custom_call.1} parent=31 // pred_check_branch
          %177 = sbr.rel (%p175) target = $region36
        $region35: #{tpu_custom_call.1} parent=31 // pred_region
          %179 = dma.done %s171, 128
        $region36: #{tpu_custom_call.1} parent=31 // pred_fallthru
          _
        // Predicated region
        $region37: #{tpu_custom_call.1} parent=31 // pred_check
          %p180 = pneg %p63
        $region38: #{tpu_custom_call.1} parent=31 // pred_check_branch
          %182 = sbr.rel (%p180) target = $region40
        $region39: #{tpu_custom_call.1} parent=31 // pred_region
          %184 = dma.done [#allocation6], 16
        $region40: #{tpu_custom_call.1} parent=31 // pred_fallthru
          _
        %s185 = sand.u32 %s29, 1
        %s186 = scalar_lea.sflag [#allocation3], %s185
        %s187 = sand.u32 %s29, 1
        %s188 = smul.addr %s187, 8
        %s189 = scalar_lea.vmem [#allocation2], %s188
        %p190 = pneg %p42
        %p191 = pneg %p39
        %p192 = pneg %p63
        %p193 = pneg %p60
        %p194 = pneg %p84
        %p195 = pneg %p81
        %p196 = pneg %p110
        %p197 = pneg %p107
        %s198 = sand.u32 %s97, 1
        %s199 = scalar_lea.sflag [#allocation4], %s198
        %s200 = sand.u32 %s97, 1
        %s201 = smul.addr %s200, 8
        %s202 = scalar_lea.vmem [#allocation7], %s201
        %v203 = vld [vmem:[%s174] sm:$0xff]
        %v204 = vld [vmem:[#allocation5] sm:$0x1]
        %v205 = vld [vmem:[%s2] sm:$0x1]
        %206 = vadd.xlane.f32.xlu0 %v203
        %v207 = vpop.xlane.xlu0 %206
        %v208 = vrcp.pop 128.0
        %v209 = vmul.f32 128.0, %v208
        %v210 = vsub.f32 1.0, %v209
        %v211 = vmul.f32 %v208, %v210
        %v212 = vadd.f32 %v208, %v211
        %vm213 = vweird.f32 %v208
        %v214 = vsel %vm213, %v208, %v212
        %v215 = vmul.f32 %v207, %v214
        %v216 = vsub.f32 %v203, %v215
        %v217 = vmul.f32 %v216, %v216
        %218 = vadd.xlane.f32.xlu0 %v217
        %v219 = vpop.xlane.xlu0 %218
        %v220 = vmul.f32 %v219, 0.007874016
        %v221 = vrsqrt.pop %v220
        %v222 = vmul.f32 %v221, %v220
        %v223 = vmul.f32 %v222, %v221
        %v224 = vmul.f32 0.5, %v223
        %v225 = vsub.f32 1.5, %v224
        %v226 = vmul.f32 %v221, %v225
        %v227 = vmul.f32 %v220, %v226
        %vm228 = vcmp.eq.f32.partialorder %v220, inf
        %v229 = vsel %vm228, %v220, %v227
        %vm230 = vcmp.eq.f32.partialorder %v220, 0.0
        %v231 = vand.u32 %v220, 2147483648
        %v232 = vsel %vm230, %v231, %v229
        %v233 = vadd.f32 %v232, 1e-06
        %v234 = vrcp.pop %v233
        %v235 = vmul.f32 %v233, %v234
        %v236 = vsub.f32 2.0, %v235
        %v237 = vmul.f32 %v234, %v236
        %v239 = vperm.slane %v204, 0
        %v241 = vmul.f32 %v239, %v237
        %v242 = vmul.f32 %v216, %v241
        %v244 = vperm.slane %v205, 0
        %v246 = vadd.f32 %v242, %v244
        %247 = vst [vmem:[%s202] sm:$0xff] %v246
        %s248 = sand.u32 %s97, 1
        %s249 = scalar_lea.sflag [#allocation4], %s248
        %s250 = sand.u32 %s97, 1
        %s251 = smul.addr %s250, 8
        %s252 = scalar_lea.vmem [#allocation7], %s251
        // Predicated region
        $region41: #{tpu_custom_call.1} parent=31 // pred_check
          %p253 = pneg %p107
        $region42: #{tpu_custom_call.1} parent=31 // pred_check_branch
          %255 = sbr.rel (%p253) target = $region44
        $region43: #{tpu_custom_call.1} parent=31 // pred_region
          %257 = vsyncadd %s249, 0
          %s258 = smul.addr %s21, 8
          %s259 = scalar_lea.hbm %s3, %s258
          %s261 = sshll.u32 %s252, 4
          %s262 = int_to_ptr.vmem [resolvable:$true] %s261
          %s263 = sshll.u32 %s259, 4
          %s264 = int_to_ptr.hbm [resolvable:$true] %s263
          %266 = dma.vmem_to_hbm [thread:$0]  %s262, 128, %s264, %s249
        $region44: #{tpu_custom_call.1} parent=31 // pred_fallthru
          _
      $region32: #{tpu_custom_call.1} parent=5 // pred_fallthru
        _
      %p267 = scmp.le.s32.totalorder 2, %s16
      // Predicated region
      $region45: #{tpu_custom_call.1} parent=5 // pred_check
        %p268 = pneg %p267
      $region46: #{tpu_custom_call.1} parent=5 // pred_check_branch
        %270 = sbr.rel (%p268) target = $region48
      $region47: #{tpu_custom_call.1} parent=5 // pred_region
        %s271 = ssub.s32 %s16, 2
        // Predicated region
        $region49: #{tpu_custom_call.1} parent=47 // pred_check
          %p272 = pneg %p113
        $region50: #{tpu_custom_call.1} parent=47 // pred_check_branch
          %274 = sbr.rel (%p272) target = $region52
        $region51: #{tpu_custom_call.1} parent=47 // pred_region
          %s275 = sand.u32 %s98, 1
          %s276 = scalar_lea.sflag [#allocation4], %s275
          %s277 = sand.u32 %s98, 1
          %s278 = smul.addr %s277, 8
          %s279 = scalar_lea.vmem [#allocation7], %s278
          %281 = dma.done %s276, 128
        $region52: #{tpu_custom_call.1} parent=47 // pred_fallthru
          _
      $region48: #{tpu_custom_call.1} parent=5 // pred_fallthru
        _
    $region6: #{tpu_custom_call.1} parent=1 // loop_footer
      %s20 = sadd.s32 1, %s16
    $region7: #{tpu_custom_call.1} parent=1 // loop_footer_branch
      %15 = sbr.rel target = $region3
    $region8: #{tpu_custom_call.1} parent=1 // loop_exit
      _
    %282 = vsyncpa [#allocation3], 1
    %s283 = scalar_lea.sflag [#allocation3], 1
    %284 = vsyncpa %s283, 1
    %285 = vsyncpa [#allocation6], 1
    %286 = vsyncpa [#allocation4], 1
    %s287 = scalar_lea.sflag [#allocation4], 1
    %288 = vsyncpa %s287, 1

</llo_original>
